<compile_context>
chip_gen: v5e
topology: v5e:2x2
jax: 0.10.0
libtpu: 0.0.40
codegen_flags: <defaults>
</compile_context>

<pallas_src>
import functools

import jax
import jax.numpy as jnp
from jax.experimental import pallas as pl
from jax.experimental.pallas import tpu as pltpu


def _round_up(x, m):
    return ((x + m - 1) // m) * m


def _sublanes(dtype):
    # Native sublane packing: 8 rows for 4-byte dtypes, 16 for 2-byte, 32 for 1-byte.
    return max(8, 32 // jnp.dtype(dtype).itemsize)


def _vmem_budgets():
    """Return (tile_budget_bytes, vmem_limit_bytes), sized per TPU generation."""
    cap = None
    try:
        cap = getattr(pltpu.get_tpu_info(), "vmem_capacity_bytes", None)
    except Exception:
        cap = None
    if not isinstance(cap, int) or cap <= 0:
        cap = 64 << 20                      # unknown -> assume the smallest (v7x-class) VMEM
    if cap >= (100 << 20):                  # v5e / v6e: 128 MiB per TensorCore
        return 96 << 20, 112 << 20
    return 26 << 20, 46 << 20               # v7x: 64 MiB per TensorCore -> leave headroom


def _maxpool_fc_flat_kernel(x_ref, w_ref, b_ref, o_ref, *, seq_len):
    """Lane-dense path.

    x_ref: (TB, H*S)  row-major flattening of torch's view(B, H, S) -> groups of S contiguous lanes.
    w_ref: (H*S, O_pad) spread weight: row h*S holds W^T[h], all other rows are zero.
    b_ref: (1, O_pad) zero-padded bias.   o_ref: (TB, O_pad).
    """
    x = x_ref[...]
    tb = x.shape[0]
    if jnp.issubdtype(x.dtype, jnp.floating):
        fill = jnp.finfo(x.dtype).min
    else:
        fill = jnp.iinfo(x.dtype).min
    # Sliding-window max of width S along the lane axis: after the loop, lane p = h*S holds
    # max(x[p : p+S]).  log2(S) steps of (static lane shift + VPU maximum); no lane padding, so
    # the VPU/XLU never chew on padding lanes and the kernel stays DMA-bound.
    m = x
    w = 1
    while w < seq_len:
        k = min(w, seq_len - w)
        pad = jnp.full((tb, k), fill, x.dtype)
        shifted = jnp.concatenate([m[:, k:], pad], axis=1)   # shifted[p] = m[p + k]
        m = jnp.maximum(m, shifted)
        w += k
    # Lanes that are not group starts hold partial maxes; their spread-weight rows are zero, so
    # they contribute exactly 0.  MXU matmul with f32 accumulation.
    y = jnp.dot(m, w_ref[...], preferred_element_type=jnp.float32)
    y = y + b_ref[...].astype(jnp.float32)
    o_ref[...] = jnp.maximum(y, 0.0).astype(o_ref.dtype)


def _maxpool_fc_blocked_kernel(x_ref, w_ref, b_ref, o_ref):
    """Fallback path (S already lane-dense, i.e. S % 128 == 0, or spread weight too large).

    x_ref: (TB, H, S) batch tile of the (B, H, S) view.  w_ref: (H, O_pad).  b_ref: (1, O_pad).
    """
    # jnp.max over the lane axis lowers to per-vreg XLU lane reduces; with S a multiple of 128
    # there are no padding lanes, so the reduce stays well under the HBM roofline.
    pooled = jnp.max(x_ref[...], axis=-1)                    # (TB, H)
    y = jnp.dot(pooled, w_ref[...], preferred_element_type=jnp.float32)
    y = y + b_ref[...].astype(jnp.float32)
    o_ref[...] = jnp.maximum(y, 0.0).astype(o_ref.dtype)


def maxpool_fc(x, weight, bias):
    """x: (B, S, H); weight: (num_class, H) (torch nn.Linear layout); bias: (num_class,)."""
    B, S, H = x.shape
    O = weight.shape[0]
    assert weight.shape == (O, H) and bias.shape == (O,)

    x_itemsize = jnp.dtype(x.dtype).itemsize
    w_itemsize = jnp.dtype(weight.dtype).itemsize
    b_itemsize = jnp.dtype(bias.dtype).itemsize
    sub = _sublanes(x.dtype)
    tile_budget, vmem_limit = _vmem_budgets()

    # Lane-dense output: pad num_class up to a multiple of 128 with zero weight/bias columns
    # (relu(p @ 0 + 0) == 0); padding sliced off below -> unmasked full-lane output stores.
    O_pad = max(128, _round_up(O, 128))
    b_p = jnp.zeros((1, O_pad), bias.dtype).at[:, :O].set(bias[None, :])

    HS = H * S
    # Resident weight/bias bytes, counted at 2x: constant-index blocks still get the default
    # double buffering (cheaper & simpler than forcing pl.Buffered(1)).
    spread_resident = 2 * (HS * O_pad * w_itemsize + O_pad * b_itemsize)
    dense_resident = 2 * (H * O_pad * w_itemsize + O_pad * b_itemsize)

    # Lane-dense path pays off only when S has lane padding, and only while the spread weight
    # stays a small fraction of the tile budget.
    use_flat = (S % 128 != 0) and (spread_resident <= tile_budget // 4)

    if use_flat:
        x_in = x.reshape(B, HS)                               # free row-major reshape (== torch view)
        w_in = jnp.zeros((HS, O_pad), weight.dtype).at[::S, :O].set(weight.T)
        row_in = _round_up(HS, 128) * x_itemsize              # physical (lane-padded) bytes per row
        resident = spread_resident
        kernel = functools.partial(_maxpool_fc_flat_kernel, seq_len=S)
        flops_k = HS
    else:
        x_in = x.reshape(B, H, S)                             # faithful to torch view(B, H, S)
        w_in = jnp.zeros((H, O_pad), weight.dtype).at[:, :O].set(weight.T)
        # Physical VMEM bytes per batch row: (sublane, lane) padding of the (H, S) slab.
        row_in = _round_up(H, sub) * _round_up(S, 128) * x_itemsize
        resident = dense_resident
        kernel = _maxpool_fc_blocked_kernel
        flops_k = H

    # Batch tile: the biggest that fits the tile budget with double-buffered x/out tiles plus the
    # (double-buffered) resident weight & bias, using PHYSICAL padded tile sizes.
    row_out = O_pad * x_itemsize
    avail = max(tile_budget - resident, 2 * (row_in + row_out))
    tb = max(1, avail // (2 * (row_in + row_out)))
    tb = min(tb, B)
    # Keep >= 2 batch tiles when B allows so ("parallel",) can shard across both TCs on v7x.
    if B >= 2 * sub:
        tb = min(tb, _round_up(-(-B // 2), sub))
    if tb < B:
        tb = max(sub, (tb // sub) * sub)                      # dtype-specific sublane alignment
    tb = int(min(tb, B))

    grid = (pl.cdiv(B, tb),)

    if use_flat:
        x_spec = pl.BlockSpec((tb, HS), lambda i: (i, 0))
    else:
        x_spec = pl.BlockSpec((tb, H, S), lambda i: (i, 0, 0))
    w_spec = pl.BlockSpec(w_in.shape, lambda i: (0,) * w_in.ndim)   # same block every step
    b_spec = pl.BlockSpec((1, O_pad), lambda i: (0, 0))

    cost = pl.CostEstimate(
        flops=2 * B * flops_k * O_pad,
        transcendentals=0,
        bytes_accessed=(x.size * x_itemsize + w_in.size * w_itemsize
                        + O_pad * b_itemsize + B * O_pad * x_itemsize),
    )

    out_pad = pl.pallas_call(
        kernel,
        out_shape=jax.ShapeDtypeStruct((B, O_pad), x.dtype),
        grid=grid,
        in_specs=[x_spec, w_spec, b_spec],
        out_specs=pl.BlockSpec((tb, O_pad), lambda i: (i, 0)),
        compiler_params=pltpu.CompilerParams(
            dimension_semantics=("parallel",),                # shard batch tiles across TCs
            vmem_limit_bytes=vmem_limit,                      # generation-aware explicit limit
        ),
        cost_estimate=cost,
    )(x_in, w_in, b_p)

    out = out_pad[:, :O]
    # torch squeezes the pooled (B, H, 1) tensor BEFORE the fc, so the only batch-shape quirk is
    # batch_size == 1, where the final output becomes (num_class,).
    return out[0] if B == 1 else out


def _reference(x, weight, bias):
    B, S, H = x.shape
    pooled = x.reshape(B, H, S).max(axis=-1)                  # faithful to torch view + max_pool1d
    out = jnp.maximum(pooled @ weight.T + bias[None, :], 0.0)
    return out[0] if B == 1 else out


if __name__ == "__main__":
    key = jax.random.PRNGKey(0)
    k1, k2, k3, k4, k5, k6 = jax.random.split(key, 6)

    # --- test 1: shapes consistent with the module, exercises the lane-dense (flat) path ---
    batch, seq_len, hidden_size, num_class = 8, 8, 32, 4
    x = jax.random.normal(k1, (batch, seq_len, hidden_size), dtype=jnp.float32)
    weight = jax.random.normal(k2, (num_class, hidden_size), dtype=jnp.float32) * 0.1
    bias = jax.random.normal(k3, (num_class,), dtype=jnp.float32) * 0.1

    out = jax.block_until_ready(maxpool_fc(x, weight, bias))
    ref = _reference(x, weight, bias)
    assert out.shape == (batch, num_class)
    assert jnp.allclose(out, ref, atol=1e-5, rtol=1e-5), "flat-path mismatch vs reference"

    # --- test 2: seq_len a multiple of 128 -> exercises the (tb, H, S) fallback path ---
    batch2, seq_len2, hidden2, num_class2 = 4, 256, 16, 4
    x2 = jax.random.normal(k4, (batch2, seq_len2, hidden2), dtype=jnp.float32)
    weight2 = jax.random.normal(k5, (num_class2, hidden2), dtype=jnp.float32) * 0.1
    bias2 = jax.random.normal(k6, (num_class2,), dtype=jnp.float32) * 0.1

    out2 = jax.block_until_ready(maxpool_fc(x2, weight2, bias2))
    ref2 = _reference(x2, weight2, bias2)
    assert out2.shape == (batch2, num_class2)
    assert jnp.allclose(out2, ref2, atol=1e-5, rtol=1e-5), "blocked-path mismatch vs reference"

    print("KERNEL_OK")
</pallas_src>

<mosaic_0001>
module attributes {stable_mosaic.version = 11 : i64} {
  func.func @_maxpool_fc_flat_kernel(%arg0: i32, %arg1: memref<8x256xf32, #tpu.memory_space<vmem>>, %arg2: memref<256x128xf32, #tpu.memory_space<vmem>>, %arg3: memref<1x128xf32, #tpu.memory_space<vmem>>, %arg4: memref<8x128xf32, #tpu.memory_space<vmem>>) attributes {dimension_semantics = [#tpu.dimension_semantics<parallel>], iteration_bounds = array<i64: 1>, scalar_prefetch = 0 : i64, scratch_operands = 0 : i64, tpu.core_type = #tpu.core_type<tc>, window_params = [{transform_indices = @transform_0, window_bounds = array<i64: 8, 256>}, {pipeline_mode = #tpu.pipeline_mode<synchronous>, transform_indices = @transform_1, window_bounds = array<i64: 256, 128>}, {pipeline_mode = #tpu.pipeline_mode<synchronous>, transform_indices = @transform_2, window_bounds = array<i64: 1, 128>}, {transform_indices = @transform_3, window_bounds = array<i64: 8, 128>}]} {
    %c0 = arith.constant 0 : index
    %c0_0 = arith.constant 0 : index
    %0 = vector.load %arg1[%c0, %c0_0] : memref<8x256xf32, #tpu.memory_space<vmem>>, vector<8x256xf32>
    %cst = arith.constant -3.40282347E+38 : f32
    %1 = vector.broadcast %cst : f32 to vector<8x1xf32>
    %2 = vector.extract_strided_slice %0 {offsets = [0, 1], sizes = [8, 255], strides = [1, 1]} : vector<8x256xf32> to vector<8x255xf32>
    %3 = tpu.concatenate %2, %1 in 1 : vector<8x255xf32>, vector<8x1xf32> -> vector<8x256xf32>
    %4 = arith.maximumf %0, %3 : vector<8x256xf32>
    %cst_1 = arith.constant -3.40282347E+38 : f32
    %5 = vector.broadcast %cst_1 : f32 to vector<8x2xf32>
    %6 = vector.extract_strided_slice %4 {offsets = [0, 2], sizes = [8, 254], strides = [1, 1]} : vector<8x256xf32> to vector<8x254xf32>
    %7 = tpu.concatenate %6, %5 in 1 : vector<8x254xf32>, vector<8x2xf32> -> vector<8x256xf32>
    %8 = arith.maximumf %4, %7 : vector<8x256xf32>
    %cst_2 = arith.constant -3.40282347E+38 : f32
    %9 = vector.broadcast %cst_2 : f32 to vector<8x4xf32>
    %10 = vector.extract_strided_slice %8 {offsets = [0, 4], sizes = [8, 252], strides = [1, 1]} : vector<8x256xf32> to vector<8x252xf32>
    %11 = tpu.concatenate %10, %9 in 1 : vector<8x252xf32>, vector<8x4xf32> -> vector<8x256xf32>
    %12 = arith.maximumf %8, %11 : vector<8x256xf32>
    %c0_3 = arith.constant 0 : index
    %c0_4 = arith.constant 0 : index
    %13 = vector.load %arg2[%c0_3, %c0_4] : memref<256x128xf32, #tpu.memory_space<vmem>>, vector<256x128xf32>
    %cst_5 = arith.constant dense<0.000000e+00> : vector<8x128xf32>
    %14 = tpu.matmul %12, %13, %cst_5 {dimension_numbers = #tpu.dot_dimension_numbers<[1], [0], [0], [1], [0, 0, 1, 1], [], []>} : vector<8x256xf32>, vector<256x128xf32>, vector<8x128xf32> -> vector<8x128xf32>
    %c0_6 = arith.constant 0 : index
    %c0_7 = arith.constant 0 : index
    %15 = vector.load %arg3[%c0_6, %c0_7] : memref<1x128xf32, #tpu.memory_space<vmem>>, vector<1x128xf32>
    %16 = vector.broadcast %15 : vector<1x128xf32> to vector<8x128xf32>
    %17 = arith.addf %14, %16 : vector<8x128xf32>
    %cst_8 = arith.constant 0.000000e+00 : f32
    %18 = vector.broadcast %cst_8 : f32 to vector<8x128xf32>
    %19 = arith.maximumf %17, %18 : vector<8x128xf32>
    %c0_9 = arith.constant 0 : index
    %c0_10 = arith.constant 0 : index
    %20 = vector.load %arg4[%c0_9, %c0_10] : memref<8x128xf32, #tpu.memory_space<vmem>>, vector<8x128xf32>
    tpu.vector_store %arg4[%c0_9, %c0_10], %19 {strides = array<i32>} : memref<8x128xf32, #tpu.memory_space<vmem>>, vector<8x128xf32>,
    return
  }
  func.func @transform_0(%arg0: i32) -> (i32, i32) {
    %c0_i32 = arith.constant 0 : i32
    %c0_i32_0 = arith.constant 0 : i32
    return %arg0, %c0_i32 : i32, i32
  }
  func.func @transform_1(%arg0: i32) -> (i32, i32) {
    %c0_i32 = arith.constant 0 : i32
    %c0_i32_0 = arith.constant 0 : i32
    %c0_i32_1 = arith.constant 0 : i32
    return %c0_i32, %c0_i32_0 : i32, i32
  }
  func.func @transform_2(%arg0: i32) -> (i32, i32) {
    %c0_i32 = arith.constant 0 : i32
    %c0_i32_0 = arith.constant 0 : i32
    %c0_i32_1 = arith.constant 0 : i32
    return %c0_i32, %c0_i32_0 : i32, i32
  }
  func.func @transform_3(%arg0: i32) -> (i32, i32) {
    %c0_i32 = arith.constant 0 : i32
    %c0_i32_0 = arith.constant 0 : i32
    return %arg0, %c0_i32 : i32, i32
  }
}

</mosaic_0001>

<llo_original>
// kernel: tpu_custom_call.1
$region0: #{tpu_custom_call.1}
  #allocation0 [shape = 'u32[]', space=smem, size = 0x4, offset = 0x4, fixed_abs, tag = 'smem constant byte address 0x4 - core index']
  #allocation1 [shape = 'u32[72,128]{1,0:T(1,128)}', space=vmem, size = 0x9000, scoped, tag = 'internal scratch']
  %s0 = inlined_call_operand.hbm [shape: f32[8,256], index: 0, kind: input, shape index: {}]
  %s1 = inlined_call_operand.hbm [shape: f32[256,128], index: 1, kind: input, shape index: {}]
  %s2 = inlined_call_operand.vmem [shape: f32[1,128], index: 2, kind: input, shape index: {}]
  %s3 = inlined_call_operand.hbm [shape: f32[8,128], index: 3, kind: output, shape index: {}]
  %s4 = sld [smem:[#allocation0]]
  $region30: #{tpu_custom_call.1} parent=0
    _
  %s6 = ssub.s32 1, %s4
  %s7 = scalar_select 0, %s6, %s4
  $region1: #{tpu_custom_call.1} parent=0
    #allocation2 [shape = 'u8[8192]{0}', space=vmem, size = 0x2000, scoped, tag = 'input window, operand 0, single buffered']
    #allocation3 [shape = 's32[1]{0}', space=sflag, size = 0x4, scoped, tag = 'scoped memory for tpu_custom_call.1']
    #allocation4 [shape = 's32[1]{0}', space=sflag, size = 0x4, scoped, tag = 'scoped memory for tpu_custom_call.1']
    #allocation5 [shape = 'u8[131072]{0}', space=vmem, size = 0x20000, scoped, tag = 'input window, operand 1, single buffered']
    #allocation6 [shape = 's32[1]{0}', space=sflag, size = 0x4, scoped, tag = 'scoped memory for tpu_custom_call.1']
    #allocation7 [shape = 'u8[4096]{0}', space=vmem, size = 0x1000, scoped, tag = 'output window, operand 0, single buffered']
    %8 = vsyncpa [#allocation3], 0
    %9 = vsyncpa [#allocation6], 0
    %10 = vsyncpa [#allocation4], 0
    // Predicated region
    $region2: #{tpu_custom_call.1} parent=1 // pred_check
      _
    $region3: #{tpu_custom_call.1} parent=1 // pred_check_branch
      %12 = sbr.rel (0) target = $region5
    $region4: #{tpu_custom_call.1} parent=1 // pred_region
      %14 = vsyncadd [#allocation3], 0
      %s16 = sshll.u32 %s0, 4
      %s17 = int_to_ptr.hbm [resolvable:$true] %s16
      %s18 = sshll.u32 [#allocation2], 4
      %s19 = int_to_ptr.vmem [resolvable:$true] %s18
      %21 = dma.hbm_to_vmem [thread:$0]  %s17, 256, %s19, [#allocation3]
    $region5: #{tpu_custom_call.1} parent=1 // pred_fallthru
      _
    // Predicated region
    $region6: #{tpu_custom_call.1} parent=1 // pred_check
      _
    $region7: #{tpu_custom_call.1} parent=1 // pred_check_branch
      %23 = sbr.rel (0) target = $region9
    $region8: #{tpu_custom_call.1} parent=1 // pred_region
      %25 = vsyncadd [#allocation6], 0
      %s26 = sshll.u32 %s1, 4
      %s27 = int_to_ptr.hbm [resolvable:$true] %s26
      %s28 = sshll.u32 [#allocation5], 4
      %s29 = int_to_ptr.vmem [resolvable:$true] %s28
      %34 = dma.hbm_to_vmem [thread:$0]  %s27, 4096, %s29, [#allocation6], 128, 128, 8
    $region9: #{tpu_custom_call.1} parent=1 // pred_fallthru
      _
    // Predicated region
    $region10: #{tpu_custom_call.1} parent=1 // pred_check
      _
    $region11: #{tpu_custom_call.1} parent=1 // pred_check_branch
      %36 = sbr.rel (0) target = $region13
    $region12: #{tpu_custom_call.1} parent=1 // pred_region
      _
    $region13: #{tpu_custom_call.1} parent=1 // pred_fallthru
      _
    // Predicated region
    $region14: #{tpu_custom_call.1} parent=1 // pred_check
      _
    $region15: #{tpu_custom_call.1} parent=1 // pred_check_branch
      %38 = sbr.rel (0) target = $region17
    $region16: #{tpu_custom_call.1} parent=1 // pred_region
      %40 = dma.done [#allocation3], 256
    $region17: #{tpu_custom_call.1} parent=1 // pred_fallthru
      _
    // Predicated region
    $region18: #{tpu_custom_call.1} parent=1 // pred_check
      _
    $region19: #{tpu_custom_call.1} parent=1 // pred_check_branch
      %42 = sbr.rel (0) target = $region21
    $region20: #{tpu_custom_call.1} parent=1 // pred_region
      %44 = dma.done [#allocation6], 4096
    $region21: #{tpu_custom_call.1} parent=1 // pred_fallthru
      _
    %v45 = vld [vmem:[#allocation2] sm:$0xff]
    %v46 = vld [vmem:[#allocation2 + $0x8] sm:$0xff]
    %49 = vrot.lane.b32.xlu0 %v45, 127
    %v50 = vpop.permute.xlu0 %49
    %51 = vrot.lane.b32.xlu0 %v46, 127
    %v52 = vpop.permute.xlu0 %51
    %vm53 = vcmask 1039360
    %v54 = vsel %vm53, %v50, %v52
    %v57 = vsel %vm53, %v52, -3.4028235e+38
    %v58 = vmax.f32 %v45, %v54
    %v59 = vmax.f32 %v46, %v57
    %62 = vrot.lane.b32.xlu0 %v58, 126
    %v63 = vpop.permute.xlu0 %62
    %64 = vrot.lane.b32.xlu0 %v59, 126
    %v65 = vpop.permute.xlu0 %64
    %vm66 = vcmask 1031168
    %v67 = vsel %vm66, %v63, %v65
    %v70 = vsel %vm66, %v65, -3.4028235e+38
    %v71 = vmax.f32 %v58, %v67
    %v72 = vmax.f32 %v59, %v70
    %75 = vrot.lane.b32.xlu0 %v71, 124
    %v76 = vpop.permute.xlu0 %75
    %77 = vrot.lane.b32.xlu0 %v72, 124
    %v78 = vpop.permute.xlu0 %77
    %vm79 = vcmask 1014784
    %v80 = vsel %vm79, %v76, %v78
    %v83 = vsel %vm79, %v78, -3.4028235e+38
    %v84 = vmax.f32 %v71, %v80
    %v85 = vmax.f32 %v72, %v83
    %v86 = vld [vmem:[#allocation5] sm:$0xff]
    %v87 = vld [vmem:[#allocation5 + $0x8] sm:$0xff]
    %v88 = vld [vmem:[#allocation5 + $0x10] sm:$0xff]
    %v89 = vld [vmem:[#allocation5 + $0x18] sm:$0xff]
    %v90 = vld [vmem:[#allocation5 + $0x20] sm:$0xff]
    %v91 = vld [vmem:[#allocation5 + $0x28] sm:$0xff]
    %v92 = vld [vmem:[#allocation5 + $0x30] sm:$0xff]
    %v93 = vld [vmem:[#allocation5 + $0x38] sm:$0xff]
    %v94 = vld [vmem:[#allocation5 + $0x40] sm:$0xff]
    %v95 = vld [vmem:[#allocation5 + $0x48] sm:$0xff]
    %v96 = vld [vmem:[#allocation5 + $0x50] sm:$0xff]
    %v97 = vld [vmem:[#allocation5 + $0x58] sm:$0xff]
    %v98 = vld [vmem:[#allocation5 + $0x60] sm:$0xff]
    %v99 = vld [vmem:[#allocation5 + $0x68] sm:$0xff]
    %v100 = vld [vmem:[#allocation5 + $0x70] sm:$0xff]
    %v101 = vld [vmem:[#allocation5 + $0x78] sm:$0xff]
    %v102 = vld [vmem:[#allocation5 + $0x80] sm:$0xff]
    %v103 = vld [vmem:[#allocation5 + $0x88] sm:$0xff]
    %v104 = vld [vmem:[#allocation5 + $0x90] sm:$0xff]
    %v105 = vld [vmem:[#allocation5 + $0x98] sm:$0xff]
    %v106 = vld [vmem:[#allocation5 + $0xa0] sm:$0xff]
    %v107 = vld [vmem:[#allocation5 + $0xa8] sm:$0xff]
    %v108 = vld [vmem:[#allocation5 + $0xb0] sm:$0xff]
    %v109 = vld [vmem:[#allocation5 + $0xb8] sm:$0xff]
    %v110 = vld [vmem:[#allocation5 + $0xc0] sm:$0xff]
    %v111 = vld [vmem:[#allocation5 + $0xc8] sm:$0xff]
    %v112 = vld [vmem:[#allocation5 + $0xd0] sm:$0xff]
    %v113 = vld [vmem:[#allocation5 + $0xd8] sm:$0xff]
    %v114 = vld [vmem:[#allocation5 + $0xe0] sm:$0xff]
    %v115 = vld [vmem:[#allocation5 + $0xe8] sm:$0xff]
    %v116 = vld [vmem:[#allocation5 + $0xf0] sm:$0xff]
    %v117 = vld [vmem:[#allocation5 + $0xf8] sm:$0xff]
    %v118 = vld [vmem:[%s2] sm:$0x1]
    %v120 = vperm.slane %v118, 0
    %122 = vmatpush.msra.mxu0 %v101
    %123 = vmatpush.msra.mxu0 %v100
    %124 = vmatpush.msra.mxu0 %v99
    %125 = vmatpush.msra.mxu0 %v98
    %126 = vmatpush.msra.mxu0 %v97
    %127 = vmatpush.msra.mxu0 %v96
    %128 = vmatpush.msra.mxu0 %v95
    %129 = vmatpush.msra.mxu0 %v94
    %130 = vmatpush.msra.mxu0 %v93
    %131 = vmatpush.msra.mxu0 %v92
    %132 = vmatpush.msra.mxu0 %v91
    %133 = vmatpush.msra.mxu0 %v90
    %134 = vmatpush.msra.mxu0 %v89
    %135 = vmatpush.msra.mxu0 %v88
    %136 = vmatpush.msra.mxu0 %v87
    %137 = vmatpush.msra.mxu0 %v86
    %138 = vmatmul.f32.gmra.mxu0 %v84
    %v139 = vpop.f32.mrf.mxu0
    %v140 = vadd.f32 %v120, %v139
    %141 = vdwg.mxu0
    %142 = vmatpush.msra.mxu0 %v117
    %143 = vmatpush.msra.mxu0 %v116
    %144 = vmatpush.msra.mxu0 %v115
    %145 = vmatpush.msra.mxu0 %v114
    %146 = vmatpush.msra.mxu0 %v113
    %147 = vmatpush.msra.mxu0 %v112
    %148 = vmatpush.msra.mxu0 %v111
    %149 = vmatpush.msra.mxu0 %v110
    %150 = vmatpush.msra.mxu0 %v109
    %151 = vmatpush.msra.mxu0 %v108
    %152 = vmatpush.msra.mxu0 %v107
    %153 = vmatpush.msra.mxu0 %v106
    %154 = vmatpush.msra.mxu0 %v105
    %155 = vmatpush.msra.mxu0 %v104
    %156 = vmatpush.msra.mxu0 %v103
    %157 = vmatpush.msra.mxu0 %v102
    %158 = vmatmul.f32.gmra.mxu0 %v85
    %v159 = vpop.f32.mrf.mxu0
    %v160 = vadd.f32 %v140, %v159
    %161 = vdwg.mxu0
    %v162 = vmax.f32 %v160, 0.0
    %163 = vst [vmem:[#allocation7] sm:$0xff] %v162
    // Predicated region
    $region22: #{tpu_custom_call.1} parent=1 // pred_check
      _
    $region23: #{tpu_custom_call.1} parent=1 // pred_check_branch
      %165 = sbr.rel (0) target = $region25
    $region24: #{tpu_custom_call.1} parent=1 // pred_region
      %167 = vsyncadd [#allocation4], 0
      %s169 = sshll.u32 [#allocation7], 4
      %s170 = int_to_ptr.vmem [resolvable:$true] %s169
      %s171 = sshll.u32 %s3, 4
      %s172 = int_to_ptr.hbm [resolvable:$true] %s171
      %174 = dma.vmem_to_hbm [thread:$0]  %s170, 128, %s172, [#allocation4]
    $region25: #{tpu_custom_call.1} parent=1 // pred_fallthru
      _
    // Predicated region
    $region26: #{tpu_custom_call.1} parent=1 // pred_check
      _
    $region27: #{tpu_custom_call.1} parent=1 // pred_check_branch
      %176 = sbr.rel (0) target = $region29
    $region28: #{tpu_custom_call.1} parent=1 // pred_region
      %178 = dma.done [#allocation4], 128
    $region29: #{tpu_custom_call.1} parent=1 // pred_fallthru
      _
    %179 = vsyncpa [#allocation3], 1
    %180 = vsyncpa [#allocation6], 1
    %181 = vsyncpa [#allocation4], 1

</llo_original>
